<compile_context>
chip_gen: v7x
topology: tpu7x:2x2x1
jax: 0.10.0
libtpu: 0.0.40
codegen_flags: <defaults>
</compile_context>

<pallas_src>
import functools
import math

import numpy as np
import jax
import jax.numpy as jnp
from jax import lax
from jax.experimental import pallas as pl
from jax.experimental.pallas import tpu as pltpu


def _soft_instance_loss_kernel(*refs, batch_size, N, TM, T1, T2, nn_num,
                               narrow_pos):
    if narrow_pos:
        z_blk_ref, zp_blk_ref, zt_ref, out_ref = refs
    else:
        z_blk_ref, zt_ref, out_ref = refs

    b = batch_size
    row0 = pl.program_id(0) * TM

    zb = z_blk_ref[...]                                   # (TM, C)
    zt = zt_ref[...]                                      # (C, N), resident (single copy)
    # (TM, N) similarity slab on the MXU, f32 accumulation.
    sim = jnp.dot(zb, zt, preferred_element_type=jnp.float32)

    # Per-block mask: one (TM, N) column iota; row / partner stay (TM, 1).
    col = lax.broadcasted_iota(jnp.int32, (TM, N), 1)
    row_idx = row0 + lax.broadcasted_iota(jnp.int32, (TM, 1), 0)
    partner = jnp.where(row_idx < b, row_idx + b, row_idx - b)
    valid = (col != row_idx) & (col != partner)           # negatives (N-2 per row)

    # Finite sentinel on purpose: exp() underflows to exact 0 on masked lanes
    # and 0 * (pd_m - m2) stays 0.  Do NOT replace with -inf.
    neg_big = jnp.float32(-1e30)
    inv_T1 = jnp.float32(1.0 / T1)
    inv_T2 = jnp.float32(1.0 / T2)
    t2_over_t1 = jnp.float32(T2 / T1)
    inv_max_entropy = jnp.float32(1.0 / math.log(N - 2))

    # ---- pseudo labels: softmax over negatives of sim / T2 ----
    pd = sim * inv_T2                                     # const mul, no N^2 divide
    pd_m = jnp.where(valid, pd, neg_big)
    m2 = jnp.max(pd_m, axis=1, keepdims=True)             # (TM, 1) lane reduce #1
    e2 = jnp.exp(pd_m - m2)                               # masked lanes -> exact 0
    s2 = jnp.sum(e2, axis=1, keepdims=True)               # (TM, 1)
    inv_s2 = pl.reciprocal(s2, approx=False)              # exact: large logits downstream
    # Fused entropy: -sum(p*logp) = log(s2) - sum(e2*(pd_m-m2)) / s2
    ent = (jnp.log(s2)
           - jnp.sum(e2 * (pd_m - m2), axis=1, keepdims=True) * inv_s2)
    c = 1.0 - ent * inv_max_entropy
    coef = jnp.float32(nn_num) * c * inv_s2               # (TM, 1)
    soft = jnp.minimum(coef * e2, 1.0)                    # labels[:, 1:]; 0 on masked cols
    inv_label_sum = pl.reciprocal(
        1.0 + jnp.sum(soft, axis=1, keepdims=True), approx=False)   # (TM, 1)

    # ---- positive logit sim[row, partner] / T1 ----
    if narrow_pos:
        # Partner rows are block-aligned (b % TM == 0): pos is a cheap (TM, C)
        # row-wise dot instead of a (TM, N) select + lane reduce.
        zp = zp_blk_ref[...]                              # (TM, C) partner rows
        pos = jnp.sum(zb.astype(jnp.float32) * zp.astype(jnp.float32),
                      axis=1, keepdims=True) * inv_T1
    else:
        is_pos = (col == partner)
        pos = jnp.sum(jnp.where(is_pos, pd, 0.0), axis=1, keepdims=True) * t2_over_t1

    # ---- final logits [positive, negatives] / T1, derived as pd * (T2/T1) ----
    # T2/T1 > 0  =>  max over negatives of pd_m*(T2/T1) == m2*(T2/T1): no 2nd full reduce.
    m1 = jnp.maximum(m2 * t2_over_t1, pos)
    e1 = jnp.exp(pd_m * t2_over_t1 - m1)                  # masked lanes -> exact 0
    lse = m1 + jnp.log(jnp.sum(e1, axis=1, keepdims=True) + jnp.exp(pos - m1))

    # loss_row = -sum_k labels_k * (logit_k - lse) = lse - weighted / label_sum
    weighted = pos + jnp.sum(soft * pd, axis=1, keepdims=True) * t2_over_t1
    loss_row = lse - weighted * inv_label_sum             # (TM, 1)

    # Lane-dense partial-sum slab (unmasked vst); wrapper reduces over blocks.
    out_ref[...] = jnp.full((1, 8, 128), jnp.sum(loss_row), dtype=jnp.float32)

    # TODO(synk): 'ahcl' / 'hard' variants need a per-row top-k over negatives;
    # only the default 'ascl' path is implemented in-kernel.
    # TODO(synk): add a column-blocked online-softmax path for very large N
    # where the resident (C, N) z.T no longer fits VMEM (v7x, 64 MiB).


def _vmem_budget():
    """Generation-aware VMEM budget: ~3/4 of per-core capacity (96 MiB on
    v5e/v6e, 48 MiB on v7x); conservative 48 MiB fallback if the query fails."""
    cap = None
    try:
        cap = getattr(pltpu.get_tpu_info(), "vmem_capacity_bytes", None)
    except Exception:
        cap = None
    if not cap:
        cap = 64 * 1024 * 1024
    return int(cap) * 3 // 4


def _choose_row_tile(b, N, C, budget_bytes, bf16=False):
    """Largest row tile (capped at 512, dividing the half-batch so nb>=2) that
    keeps ~12 live (TM,N) f32 slabs + single-buffered z.T + double-buffered row
    slabs under the budget.  Returns (TM, narrow_pos)."""
    elem = 2 if bf16 else 4
    resident = C * N * elem                       # z.T, single-buffered in VMEM
    per_row = 12 * N * 4 + 2 * 2 * C * elem       # live slabs + 2 double-buffered (TM,C) inputs
    avail = max(budget_bytes - resident, 8 * per_row)
    tm_cap = max(8, avail // per_row)
    min_mult = 16 if bf16 else 8                  # bf16 needs (16,128) sublane tiles
    for cand in (512, 256, 128, 64, 32, 16, 8):
        if (cand <= tm_cap and cand <= b and b % cand == 0
                and cand % min_mult == 0):
            return cand, True                     # narrow-pos path, nb = N/cand >= 2
    return N, False                               # single-block fallback (full dims always legal)


def soft_instance_loss(z_i, z_j, *, T1=0.1, T2=0.05, nn_num=1,
                       use_bf16_matmul=False, row_tile=None):
    """Pallas implementation of SoftInstanceLoss(type='ascl').forward."""
    assert z_i.shape == z_j.shape and z_i.ndim == 2
    assert T1 > 0.0 and T2 > 0.0, "temperatures must be > 0 (m1 shortcut relies on T2/T1 > 0)"
    b, C = z_i.shape
    assert b >= 2, "batch_size must be >= 2 (need N-2 >= 2 negatives per row)"
    N = 2 * b

    # One (N, C) concat + transpose in the wrapper: O(N*C), negligible next to
    # the N^2 in-kernel work; keeps the BlockSpecs simple.
    z = jnp.concatenate([z_i, z_j], axis=0)
    # bf16 LHS is a v5e MXU / VMEM win but loosens accuracy for unnormalized
    # features; off by default to keep the tight check below.
    lhs_dtype = jnp.bfloat16 if use_bf16_matmul else jnp.float32
    z_lhs = z.astype(lhs_dtype)
    zt = z_lhs.T                                           # (C, N), resident operand

    budget = _vmem_budget()
    if row_tile is not None:
        TM = int(row_tile)
        assert N % TM == 0
        min_mult = 16 if use_bf16_matmul else 8
        assert TM % min_mult == 0 or TM == N, (
            f"row_tile must be a multiple of {min_mult} (or == N) for this dtype")
        narrow_pos = (TM <= b) and (b % TM == 0)
    else:
        TM, narrow_pos = _choose_row_tile(b, N, C, budget, bf16=use_bf16_matmul)
    nb = N // TM

    kernel = functools.partial(
        _soft_instance_loss_kernel,
        batch_size=b, N=N, TM=TM, T1=float(T1), T2=float(T2),
        nn_num=float(nn_num), narrow_pos=narrow_pos)

    in_specs = [pl.BlockSpec((TM, C), lambda i: (i, 0))]   # streamed row slab
    operands = [z_lhs]
    if narrow_pos:
        half = nb // 2
        # Partner rows of block i are exactly block (i + nb/2) mod nb (b % TM == 0).
        in_specs.append(pl.BlockSpec((TM, C), lambda i: ((i + half) % nb, 0)))
        operands.append(z_lhs)
    # z.T: whole array resident in VMEM, single copy (no per-step double buffer).
    in_specs.append(pl.BlockSpec(memory_space=pltpu.MemorySpace.VMEM))
    operands.append(zt)

    partials = pl.pallas_call(
        kernel,
        out_shape=jax.ShapeDtypeStruct((nb, 8, 128), jnp.float32),
        grid_spec=pltpu.PrefetchScalarGridSpec(
            num_scalar_prefetch=0,
            grid=(nb,),
            in_specs=in_specs,
            out_specs=pl.BlockSpec((1, 8, 128), lambda i: (i, 0, 0)),
        ),
        compiler_params=pltpu.CompilerParams(
            dimension_semantics=("parallel",),             # row blocks independent (v7x 2 TCs)
            vmem_limit_bytes=int(budget),                  # generation-aware scoped limit
        ),
    )(*operands)

    return jnp.sum(partials[:, 0, 0]) / N


def _reference_loss(z_i, z_j, *, T1=0.1, T2=0.05, nn_num=1):
    """Pure-JAX/numpy reference mirroring the PyTorch code literally."""
    b, _ = z_i.shape
    N = 2 * b
    z = jnp.concatenate([z_i, z_j], axis=0).astype(jnp.float32)
    sim = z @ z.T

    mask = np.ones((N, N), dtype=bool)
    np.fill_diagonal(mask, False)
    for i in range(b):
        mask[i, b + i] = False
        mask[b + i, i] = False
    cols = np.stack([np.where(mask[i])[0] for i in range(N)])   # (N, N-2)
    rows = np.arange(N)[:, None]

    logits_pd = (sim / T2)[rows, cols]                          # (N, N-2)
    p = jax.nn.softmax(logits_pd, axis=1)
    logp = jax.nn.log_softmax(logits_pd, axis=1)
    entropy = -jnp.sum(p * logp, axis=1, keepdims=True)
    c = 1.0 - entropy / np.log(N - 2)
    soft = jnp.minimum(nn_num * c * p, 1.0)
    labels = jnp.concatenate([jnp.ones((N, 1)), soft], axis=1)
    labels = labels / labels.sum(axis=1, keepdims=True)

    pos = jnp.concatenate([jnp.diagonal(sim, b), jnp.diagonal(sim, -b)]).reshape(N, 1)
    neg = sim[rows, cols]
    logits = jnp.concatenate([pos, neg], axis=1) / T1
    return (-jnp.sum(labels * jax.nn.log_softmax(logits, axis=1), axis=1)).mean()


if __name__ == "__main__":
    batch_size = 8
    hidden = 32
    key = jax.random.PRNGKey(0)
    k1, k2 = jax.random.split(key)
    z_i = jax.random.normal(k1, (batch_size, hidden), dtype=jnp.float32)
    z_j = jax.random.normal(k2, (batch_size, hidden), dtype=jnp.float32)

    ref = _reference_loss(z_i, z_j, T1=0.1, T2=0.05, nn_num=1)

    # Exercise both code paths:
    #   None -> chooser picks TM=8, 2 row blocks, narrow-pos (partner-block dot)
    #   16   -> TM == N single block, full-width pos fallback
    for rt in (None, 16):
        loss = soft_instance_loss(z_i, z_j, T1=0.1, T2=0.05, nn_num=1, row_tile=rt)
        loss = jax.block_until_ready(loss)
        # 5e-4: fused constant scales / reordered reductions differ from the
        # reference by a few ulps on logits of magnitude ~|sim|/T, visible at
        # ~1e-4 after the lse - weighted/label_sum cancellation.
        np.testing.assert_allclose(np.asarray(loss), np.asarray(ref),
                                   rtol=5e-4, atol=5e-4)

    print("KERNEL_OK")
</pallas_src>

<mosaic_0001>
module attributes {stable_mosaic.version = 11 : i64} {
  func.func @_soft_instance_loss_kernel(%arg0: i32, %arg1: memref<8x32xf32, #tpu.memory_space<vmem>>, %arg2: memref<8x32xf32, #tpu.memory_space<vmem>>, %arg3: memref<32x16xf32, #tpu.memory_space<vmem>>, %arg4: memref<1x8x128xf32, #tpu.memory_space<vmem>>) attributes {dimension_semantics = [#tpu.dimension_semantics<parallel>], iteration_bounds = array<i64: 2>, scalar_prefetch = 0 : i64, scratch_operands = 0 : i64, tpu.core_type = #tpu.core_type<tc>, window_params = [{transform_indices = @transform_0, window_bounds = array<i64: 8, 32>}, {transform_indices = @transform_1, window_bounds = array<i64: 8, 32>}, {pipeline_mode = #tpu.pipeline_mode<synchronous>, transform_indices = @transform_2, window_bounds = array<i64: 32, 16>}, {transform_indices = @transform_3, window_bounds = array<i64: 1, 8, 128>}]} {
    %c8_i32 = arith.constant 8 : i32
    %0 = arith.muli %arg0, %c8_i32 : i32
    %c0 = arith.constant 0 : index
    %c0_0 = arith.constant 0 : index
    %1 = vector.load %arg1[%c0, %c0_0] : memref<8x32xf32, #tpu.memory_space<vmem>>, vector<8x32xf32>
    %c0_1 = arith.constant 0 : index
    %c0_2 = arith.constant 0 : index
    %2 = vector.load %arg3[%c0_1, %c0_2] : memref<32x16xf32, #tpu.memory_space<vmem>>, vector<32x16xf32>
    %cst = arith.constant dense<0.000000e+00> : vector<8x16xf32>
    %3 = tpu.matmul %1, %2, %cst {dimension_numbers = #tpu.dot_dimension_numbers<[1], [0], [0], [1], [0, 0, 1, 1], [], []>} : vector<8x32xf32>, vector<32x16xf32>, vector<8x16xf32> -> vector<8x16xf32>
    %4 = tpu.iota {dimensions = array<i32: 1>} : vector<8x16xi32>
    %5 = tpu.iota {dimensions = array<i32: 0>} : vector<8x1xi32>
    %6 = vector.broadcast %0 : i32 to vector<8x1xi32>
    %7 = arith.addi %6, %5 : vector<8x1xi32>
    %c8_i32_3 = arith.constant 8 : i32
    %8 = vector.broadcast %c8_i32_3 : i32 to vector<8x1xi32>
    %9 = arith.cmpi slt, %7, %8 : vector<8x1xi32>
    %c8_i32_4 = arith.constant 8 : i32
    %10 = vector.broadcast %c8_i32_4 : i32 to vector<8x1xi32>
    %11 = arith.addi %7, %10 : vector<8x1xi32>
    %c8_i32_5 = arith.constant 8 : i32
    %12 = vector.broadcast %c8_i32_5 : i32 to vector<8x1xi32>
    %13 = arith.subi %7, %12 : vector<8x1xi32>
    %14 = arith.select %9, %11, %13 : vector<8x1xi1>, vector<8x1xi32>
    %15 = vector.broadcast %7 : vector<8x1xi32> to vector<8x16xi32>
    %16 = arith.cmpi ne, %4, %15 : vector<8x16xi32>
    %17 = vector.broadcast %14 : vector<8x1xi32> to vector<8x16xi32>
    %18 = arith.cmpi ne, %4, %17 : vector<8x16xi32>
    %19 = arith.andi %16, %18 : vector<8x16xi1>
    %cst_6 = arith.constant 2.000000e+01 : f32
    %20 = vector.broadcast %cst_6 : f32 to vector<8x16xf32>
    %21 = arith.mulf %3, %20 : vector<8x16xf32>
    %cst_7 = arith.constant -1.000000e+30 : f32
    %22 = vector.broadcast %cst_7 : f32 to vector<8x16xf32>
    %23 = arith.select %19, %21, %22 : vector<8x16xi1>, vector<8x16xf32>
    %cst_8 = arith.constant dense<0xFF800000> : vector<8xf32>
    %24 = vector.multi_reduction <maximumf>, %23, %cst_8 [1] : vector<8x16xf32> to vector<8xf32>
    %25 = vector.shape_cast %24 : vector<8xf32> to vector<8x1xf32>
    %26 = vector.broadcast %25 : vector<8x1xf32> to vector<8x16xf32>
    %27 = arith.subf %23, %26 : vector<8x16xf32>
    %28 = math.exp %27 : vector<8x16xf32>
    %cst_9 = arith.constant dense<0.000000e+00> : vector<8xf32>
    %29 = vector.multi_reduction <add>, %28, %cst_9 [1] : vector<8x16xf32> to vector<8xf32>
    %30 = vector.shape_cast %29 : vector<8xf32> to vector<8x1xf32>
    %31 = tpu.reciprocal %30 : vector<8x1xf32> -> vector<8x1xf32>
    %32 = math.log %30 : vector<8x1xf32>
    %33 = vector.broadcast %25 : vector<8x1xf32> to vector<8x16xf32>
    %34 = arith.subf %23, %33 : vector<8x16xf32>
    %35 = arith.mulf %28, %34 : vector<8x16xf32>
    %cst_10 = arith.constant dense<0.000000e+00> : vector<8xf32>
    %36 = vector.multi_reduction <add>, %35, %cst_10 [1] : vector<8x16xf32> to vector<8xf32>
    %37 = vector.shape_cast %36 : vector<8xf32> to vector<8x1xf32>
    %38 = arith.mulf %37, %31 : vector<8x1xf32>
    %39 = arith.subf %32, %38 : vector<8x1xf32>
    %cst_11 = arith.constant 0.378923178 : f32
    %40 = vector.broadcast %cst_11 : f32 to vector<8x1xf32>
    %41 = arith.mulf %39, %40 : vector<8x1xf32>
    %cst_12 = arith.constant 1.000000e+00 : f32
    %42 = vector.broadcast %cst_12 : f32 to vector<8x1xf32>
    %43 = arith.subf %42, %41 : vector<8x1xf32>
    %cst_13 = arith.constant 1.000000e+00 : f32
    %44 = vector.broadcast %cst_13 : f32 to vector<8x1xf32>
    %45 = arith.mulf %44, %43 : vector<8x1xf32>
    %46 = arith.mulf %45, %31 : vector<8x1xf32>
    %47 = vector.broadcast %46 : vector<8x1xf32> to vector<8x16xf32>
    %48 = arith.mulf %47, %28 : vector<8x16xf32>
    %cst_14 = arith.constant 1.000000e+00 : f32
    %49 = vector.broadcast %cst_14 : f32 to vector<8x16xf32>
    %50 = arith.minimumf %48, %49 : vector<8x16xf32>
    %cst_15 = arith.constant dense<0.000000e+00> : vector<8xf32>
    %51 = vector.multi_reduction <add>, %50, %cst_15 [1] : vector<8x16xf32> to vector<8xf32>
    %52 = vector.shape_cast %51 : vector<8xf32> to vector<8x1xf32>
    %cst_16 = arith.constant 1.000000e+00 : f32
    %53 = vector.broadcast %cst_16 : f32 to vector<8x1xf32>
    %54 = arith.addf %53, %52 : vector<8x1xf32>
    %55 = tpu.reciprocal %54 : vector<8x1xf32> -> vector<8x1xf32>
    %c0_17 = arith.constant 0 : index
    %c0_18 = arith.constant 0 : index
    %56 = vector.load %arg2[%c0_17, %c0_18] : memref<8x32xf32, #tpu.memory_space<vmem>>, vector<8x32xf32>
    %57 = arith.mulf %1, %56 : vector<8x32xf32>
    %cst_19 = arith.constant dense<0.000000e+00> : vector<8xf32>
    %58 = vector.multi_reduction <add>, %57, %cst_19 [1] : vector<8x32xf32> to vector<8xf32>
    %59 = vector.shape_cast %58 : vector<8xf32> to vector<8x1xf32>
    %cst_20 = arith.constant 1.000000e+01 : f32
    %60 = vector.broadcast %cst_20 : f32 to vector<8x1xf32>
    %61 = arith.mulf %59, %60 : vector<8x1xf32>
    %cst_21 = arith.constant 5.000000e-01 : f32
    %62 = vector.broadcast %cst_21 : f32 to vector<8x1xf32>
    %63 = arith.mulf %25, %62 : vector<8x1xf32>
    %64 = arith.maximumf %63, %61 : vector<8x1xf32>
    %cst_22 = arith.constant 5.000000e-01 : f32
    %65 = vector.broadcast %cst_22 : f32 to vector<8x16xf32>
    %66 = arith.mulf %23, %65 : vector<8x16xf32>
    %67 = vector.broadcast %64 : vector<8x1xf32> to vector<8x16xf32>
    %68 = arith.subf %66, %67 : vector<8x16xf32>
    %69 = math.exp %68 : vector<8x16xf32>
    %cst_23 = arith.constant dense<0.000000e+00> : vector<8xf32>
    %70 = vector.multi_reduction <add>, %69, %cst_23 [1] : vector<8x16xf32> to vector<8xf32>
    %71 = vector.shape_cast %70 : vector<8xf32> to vector<8x1xf32>
    %72 = arith.subf %61, %64 : vector<8x1xf32>
    %73 = math.exp %72 : vector<8x1xf32>
    %74 = arith.addf %71, %73 : vector<8x1xf32>
    %75 = math.log %74 : vector<8x1xf32>
    %76 = arith.addf %64, %75 : vector<8x1xf32>
    %77 = arith.mulf %50, %21 : vector<8x16xf32>
    %cst_24 = arith.constant dense<0.000000e+00> : vector<8xf32>
    %78 = vector.multi_reduction <add>, %77, %cst_24 [1] : vector<8x16xf32> to vector<8xf32>
    %79 = vector.shape_cast %78 : vector<8xf32> to vector<8x1xf32>
    %cst_25 = arith.constant 5.000000e-01 : f32
    %80 = vector.broadcast %cst_25 : f32 to vector<8x1xf32>
    %81 = arith.mulf %79, %80 : vector<8x1xf32>
    %82 = arith.addf %61, %81 : vector<8x1xf32>
    %83 = arith.mulf %82, %55 : vector<8x1xf32>
    %84 = arith.subf %76, %83 : vector<8x1xf32>
    %85 = vector.shape_cast %84 : vector<8x1xf32> to vector<1x8x1xf32>
    %cst_26 = arith.constant dense<0.000000e+00> : vector<1xf32>
    %86 = vector.multi_reduction <add>, %85, %cst_26 [1, 2] : vector<1x8x1xf32> to vector<1xf32>
    %87 = vector.shape_cast %86 : vector<1xf32> to vector<1x1x1xf32>
    %88 = vector.extract %87[0, 0, 0] : f32 from vector<1x1x1xf32>
    %89 = vector.broadcast %88 : f32 to vector<1x8x128xf32>
    %c0_27 = arith.constant 0 : index
    %c0_28 = arith.constant 0 : index
    %c0_29 = arith.constant 0 : index
    %90 = vector.load %arg4[%c0_27, %c0_28, %c0_29] : memref<1x8x128xf32, #tpu.memory_space<vmem>>, vector<1x8x128xf32>
    tpu.vector_store %arg4[%c0_27, %c0_28, %c0_29], %89 {strides = array<i32>} : memref<1x8x128xf32, #tpu.memory_space<vmem>>, vector<1x8x128xf32>,
    return
  }
  func.func @transform_0(%arg0: i32) -> (i32, i32) {
    %c0_i32 = arith.constant 0 : i32
    %c0_i32_0 = arith.constant 0 : i32
    return %arg0, %c0_i32 : i32, i32
  }
  func.func @transform_1(%arg0: i32) -> (i32, i32) {
    %c1_i32 = arith.constant 1 : i32
    %0 = arith.addi %arg0, %c1_i32 : i32
    %c2_i32 = arith.constant 2 : i32
    %c0_i32 = arith.constant 0 : i32
    %1 = arith.cmpi eq, %c2_i32, %c0_i32 : i32
    %c1_i32_0 = arith.constant 1 : i32
    %2 = arith.select %1, %c1_i32_0, %c2_i32 : i32
    %3 = arith.remsi %0, %2 : i32
    %c0_i32_1 = arith.constant 0 : i32
    %4 = arith.cmpi ne, %3, %c0_i32_1 : i32
    %c0_i32_2 = arith.constant 0 : i32
    %5 = arith.cmpi slt, %3, %c0_i32_2 : i32
    %c0_i32_3 = arith.constant 0 : i32
    %6 = arith.cmpi slt, %2, %c0_i32_3 : i32
    %7 = arith.xori %5, %6 : i1
    %8 = arith.andi %7, %4 : i1
    %9 = arith.addi %3, %2 : i32
    %10 = arith.select %8, %9, %3 : i32
    %c0_i32_4 = arith.constant 0 : i32
    %c0_i32_5 = arith.constant 0 : i32
    return %10, %c0_i32_4 : i32, i32
  }
  func.func @transform_2(%arg0: i32) -> (i32, i32) {
    %c0_i32 = arith.constant 0 : i32
    %c0_i32_0 = arith.constant 0 : i32
    %c0_i32_1 = arith.constant 0 : i32
    return %c0_i32, %c0_i32_0 : i32, i32
  }
  func.func @transform_3(%arg0: i32) -> (i32, i32, i32) {
    %c0_i32 = arith.constant 0 : i32
    %c0_i32_0 = arith.constant 0 : i32
    %c0_i32_1 = arith.constant 0 : i32
    return %arg0, %c0_i32, %c0_i32_0 : i32, i32, i32
  }
}

</mosaic_0001>

<llo_original>
// kernel: tpu_custom_call.1
$region0: #{tpu_custom_call.1}
  #allocation0 [shape = 'u32[]', space=smem, size = 0x4, offset = 0x4, fixed_abs, tag = 'smem constant byte address 0x4 - core index']
  #allocation1 [shape = 'u32[144,128]{1,0:T(1,128)}', space=vmem, size = 0x12000, scoped, tag = 'internal scratch']
  %s0 = inlined_call_operand.vmem [shape: f32[16,32], index: 0, kind: input, shape index: {}]
  %s1 = inlined_call_operand.vmem [shape: f32[16,32], index: 1, kind: input, shape index: {}]
  %s2 = inlined_call_operand.vmem [shape: f32[32,16], index: 2, kind: input, shape index: {}]
  %s3 = inlined_call_operand.hbm [shape: f32[2,8,128], index: 3, kind: output, shape index: {}]
  %s4 = sld [smem:[#allocation0]]
  $region45: #{tpu_custom_call.1} parent=0
    _
  %s6 = ssub.s32 1, %s4
  %s7 = scalar_select 0, %s6, %s4
  $region1: #{tpu_custom_call.1} parent=0
    #allocation2 [shape = 'u8[8192]{0}', space=vmem, size = 0x2000, scoped, tag = 'output window, operand 0']
    #allocation3 [shape = 's32[2]{0}', space=sflag, size = 0x8, scoped, tag = 'scoped memory for tpu_custom_call.1']
    %8 = vsyncpa [#allocation3], 0
    %s9 = scalar_lea.sflag [#allocation3], 1
    %10 = vsyncpa %s9, 0
    loop: start=0, step=1, limit=4
    $region2: #{tpu_custom_call.1} parent=1 // loop_pre_header
      _
    $region3: #{tpu_custom_call.1} parent=1 // loop_header
      %s12 = sphi 0, %s16
      %p13 = scmp.ge.s32.totalorder %s12, 4
      %s22 = sphi 0, %s24
      %s25 = sphi 0, %s22
      %s26 = sphi 0, %s25
      %s42 = sphi 0, %s26
      %s74 = sphi 0, %s76
      %s77 = sphi 0, %s74
      %s78 = sphi 0, %s77
      %s94 = sphi 0, %s78
      %s98 = sphi 0, %s98
      %s100 = sphi 0, %s98
      %s101 = sphi 0, %s100
      %s115 = sphi 0, %s101
      %s121 = sphi 0, %s123
      %s124 = sphi 0, %s121
      %s125 = sphi 0, %s124
      %s141 = sphi 0, %s125
    $region4: #{tpu_custom_call.1} parent=1 // loop_header_branch
      %15 = sbr.rel (%p13) target = $region8
    $region5: #{tpu_custom_call.1} parent=1 // loop_body
      %s17 = ssub.s32 %s12, 1
      %s18 = ssub.s32 %s12, 2
      %s19 = sadd.s32 %s12, 1
      %s20 = ssub.s32 %s12, %s19
      %p21 = scmp.eq.s32.totalorder %s20, 0
      %s23 = sadd.s32 %s22, 1
      %s24 = scalar_select %p21, %s22, %s23
      %p27 = pneg %p21
      %p28 = scmp.eq.s32.totalorder %s12, 1
      %p29 = por %p27, %p28
      %p30 = scmp.ne.s32.totalorder %s22, %s25
      %p31 = scmp.eq.s32.totalorder %s12, 0
      %p32 = por %p30, %p31
      %p33 = scmp.ne.s32.totalorder %s22, %s25
      %p34 = scmp.eq.s32.totalorder %s17, 1
      %p35 = por %p33, %p34
      %p36 = scmp.ne.s32.totalorder %s25, %s26
      %p37 = scmp.eq.s32.totalorder %s17, 0
      %p38 = por %p36, %p37
      %p39 = scmp.ne.s32.totalorder %s25, %s26
      %p40 = scmp.eq.s32.totalorder %s18, 1
      %p41 = por %p39, %p40
      %p43 = scmp.ne.s32.totalorder %s26, %s42
      %p44 = scmp.eq.s32.totalorder %s18, 0
      %p45 = por %p43, %p44
      %s46 = sadd.s32 %s12, 1
      %p47 = scmp.lt.s32.totalorder %s46, 0
      %s48 = ssub.s32 0, %s46
      %s49 = scalar_select %p47, %s48, %s46
      %s50 = sand.u32 %s49, 1
      %s51 = ssub.s32 0, %s50
      %s52 = scalar_select %p47, %s51, %s50
      %p53 = scmp.ne.s32.totalorder %s52, 0
      %p54 = scmp.lt.s32.totalorder %s52, 0
      %p55 = pnand %p54, %p53
      %p56 = pneg %p55
      %s57 = sadd.s32 %s52, 2
      %s58 = scalar_select %p56, %s57, %s52
      %s59 = sadd.s32 %s19, 1
      %p60 = scmp.lt.s32.totalorder %s59, 0
      %s61 = ssub.s32 0, %s59
      %s62 = scalar_select %p60, %s61, %s59
      %s63 = sand.u32 %s62, 1
      %s64 = ssub.s32 0, %s63
      %s65 = scalar_select %p60, %s64, %s63
      %p66 = scmp.ne.s32.totalorder %s65, 0
      %p67 = scmp.lt.s32.totalorder %s65, 0
      %p68 = pnand %p67, %p66
      %p69 = pneg %p68
      %s70 = sadd.s32 %s65, 2
      %s71 = scalar_select %p69, %s70, %s65
      %s72 = ssub.s32 %s58, %s71
      %p73 = scmp.eq.s32.totalorder %s72, 0
      %s75 = sadd.s32 %s74, 1
      %s76 = scalar_select %p73, %s74, %s75
      %p79 = pneg %p73
      %p80 = scmp.eq.s32.totalorder %s12, 1
      %p81 = por %p79, %p80
      %p82 = scmp.ne.s32.totalorder %s74, %s77
      %p83 = scmp.eq.s32.totalorder %s12, 0
      %p84 = por %p82, %p83
      %p85 = scmp.ne.s32.totalorder %s74, %s77
      %p86 = scmp.eq.s32.totalorder %s17, 1
      %p87 = por %p85, %p86
      %p88 = scmp.ne.s32.totalorder %s77, %s78
      %p89 = scmp.eq.s32.totalorder %s17, 0
      %p90 = por %p88, %p89
      %p91 = scmp.ne.s32.totalorder %s77, %s78
      %p92 = scmp.eq.s32.totalorder %s18, 1
      %p93 = por %p91, %p92
      %p95 = scmp.ne.s32.totalorder %s78, %s94
      %p96 = scmp.eq.s32.totalorder %s18, 0
      %p97 = por %p95, %p96
      %s99 = sadd.s32 %s98, 1
      %p102 = scmp.eq.s32.totalorder %s12, 1
      %p103 = scmp.ne.s32.totalorder %s98, %s100
      %p104 = scmp.eq.s32.totalorder %s12, 0
      %p105 = por %p103, %p104
      %p106 = scmp.ne.s32.totalorder %s98, %s100
      %p107 = scmp.eq.s32.totalorder %s17, 1
      %p108 = por %p106, %p107
      %p109 = scmp.ne.s32.totalorder %s100, %s101
      %p110 = scmp.eq.s32.totalorder %s17, 0
      %p111 = por %p109, %p110
      %p112 = scmp.ne.s32.totalorder %s100, %s101
      %p113 = scmp.eq.s32.totalorder %s18, 1
      %p114 = por %p112, %p113
      %p116 = scmp.ne.s32.totalorder %s101, %s115
      %p117 = scmp.eq.s32.totalorder %s18, 0
      %p118 = por %p116, %p117
      %s119 = ssub.s32 %s12, %s19
      %p120 = scmp.eq.s32.totalorder %s119, 0
      %s122 = sadd.s32 %s121, 1
      %s123 = scalar_select %p120, %s121, %s122
      %p126 = pneg %p120
      %p127 = scmp.eq.s32.totalorder %s12, 1
      %p128 = por %p126, %p127
      %p129 = scmp.ne.s32.totalorder %s121, %s124
      %p130 = scmp.eq.s32.totalorder %s12, 0
      %p131 = por %p129, %p130
      %p132 = scmp.ne.s32.totalorder %s121, %s124
      %p133 = scmp.eq.s32.totalorder %s17, 1
      %p134 = por %p132, %p133
      %p135 = scmp.ne.s32.totalorder %s124, %s125
      %p136 = scmp.eq.s32.totalorder %s17, 0
      %p137 = por %p135, %p136
      %p138 = scmp.ne.s32.totalorder %s124, %s125
      %p139 = scmp.eq.s32.totalorder %s18, 1
      %p140 = por %p138, %p139
      %p142 = scmp.ne.s32.totalorder %s125, %s141
      %p143 = scmp.eq.s32.totalorder %s18, 0
      %p144 = por %p142, %p143
      %p145 = scmp.le.s32.totalorder 1, %s12
      %p146 = scmp.lt.s32.totalorder %s12, 3
      %p147 = pnand %p145, %p146
      %p148 = pneg %p147
      // Predicated region
      $region9: #{tpu_custom_call.1} parent=5 // pred_check
        _
      $region10: #{tpu_custom_call.1} parent=5 // pred_check_branch
        %150 = sbr.rel (%p147) target = $region12
      $region11: #{tpu_custom_call.1} parent=5 // pred_region
        %s151 = ssub.s32 %s12, 1
        // Predicated region
        $region13: #{tpu_custom_call.1} parent=11 // pred_check
          %p152 = pneg %p111
        $region14: #{tpu_custom_call.1} parent=11 // pred_check_branch
          %154 = sbr.rel (%p152) target = $region16
        $region15: #{tpu_custom_call.1} parent=11 // pred_region
          _
        $region16: #{tpu_custom_call.1} parent=11 // pred_fallthru
          _
      $region12: #{tpu_custom_call.1} parent=5 // pred_fallthru
        _
      %p155 = scmp.lt.s32.totalorder %s12, 2
      // Predicated region
      $region17: #{tpu_custom_call.1} parent=5 // pred_check
        %p156 = pneg %p155
      $region18: #{tpu_custom_call.1} parent=5 // pred_check_branch
        %158 = sbr.rel (%p156) target = $region20
      $region19: #{tpu_custom_call.1} parent=5 // pred_region
        // Predicated region
        $region21: #{tpu_custom_call.1} parent=19 // pred_check
          %p159 = pneg %p32
        $region22: #{tpu_custom_call.1} parent=19 // pred_check_branch
          %161 = sbr.rel (%p159) target = $region24
        $region23: #{tpu_custom_call.1} parent=19 // pred_region
          %p162 = scmp.lt.s32.totalorder %s12, 1
          %s163 = scalar_select %p162, %s12, 1
          %s164 = smul.addr %s163, 8
          %s165 = scalar_lea.vmem %s0, %s164
        $region24: #{tpu_custom_call.1} parent=19 // pred_fallthru
          _
        // Predicated region
        $region25: #{tpu_custom_call.1} parent=19 // pred_check
          %p166 = pneg %p84
        $region26: #{tpu_custom_call.1} parent=19 // pred_check_branch
          %168 = sbr.rel (%p166) target = $region28
        $region27: #{tpu_custom_call.1} parent=19 // pred_region
          %s169 = sadd.s32 %s12, 1
          %p170 = scmp.lt.s32.totalorder %s169, 0
          %s171 = ssub.s32 0, %s169
          %s172 = scalar_select %p170, %s171, %s169
          %s173 = sand.u32 %s172, 1
          %s174 = ssub.s32 0, %s173
          %s175 = scalar_select %p170, %s174, %s173
          %p176 = scmp.ne.s32.totalorder %s175, 0
          %p177 = scmp.lt.s32.totalorder %s175, 0
          %p178 = pnand %p177, %p176
          %p179 = pneg %p178
          %s180 = sadd.s32 %s175, 2
          %s181 = scalar_select %p179, %s180, %s175
          %p182 = scmp.lt.s32.totalorder %s181, 1
          %s183 = scalar_select %p182, %s181, 1
          %s184 = smul.addr %s183, 8
          %s185 = scalar_lea.vmem %s1, %s184
          %s186 = sadd.s32 %s12, 1
          %p187 = scmp.lt.s32.totalorder %s186, 0
          %s188 = ssub.s32 0, %s186
          %s189 = scalar_select %p187, %s188, %s186
          %s190 = sand.u32 %s189, 1
          %s191 = ssub.s32 0, %s190
          %s192 = scalar_select %p187, %s191, %s190
          %p193 = scmp.ne.s32.totalorder %s192, 0
          %p194 = scmp.lt.s32.totalorder %s192, 0
          %p195 = pnand %p194, %p193
          %p196 = pneg %p195
          %s197 = sadd.s32 %s192, 2
          %s198 = scalar_select %p196, %s197, %s192
        $region28: #{tpu_custom_call.1} parent=19 // pred_fallthru
          _
      $region20: #{tpu_custom_call.1} parent=5 // pred_fallthru
        _
      %p199 = scmp.le.s32.totalorder 1, %s12
      %p200 = scmp.lt.s32.totalorder %s12, 3
      %p201 = pnand %p199, %p200
      %p202 = pneg %p201
      // Predicated region
      $region29: #{tpu_custom_call.1} parent=5 // pred_check
        _
      $region30: #{tpu_custom_call.1} parent=5 // pred_check_branch
        %204 = sbr.rel (%p201) target = $region32
      $region31: #{tpu_custom_call.1} parent=5 // pred_region
        %s205 = ssub.s32 %s12, 1
        %p206 = scmp.lt.s32.totalorder %s17, 1
        %s207 = scalar_select %p206, %s17, 1
        %s208 = smul.addr %s207, 8
        %s209 = scalar_lea.vmem %s0, %s208
        %p210 = pneg %p38
        %p211 = pneg %p35
        %s212 = sadd.s32 %s17, 1
        %p213 = scmp.lt.s32.totalorder %s212, 0
        %s214 = ssub.s32 0, %s212
        %s215 = scalar_select %p213, %s214, %s212
        %s216 = sand.u32 %s215, 1
        %s217 = ssub.s32 0, %s216
        %s218 = scalar_select %p213, %s217, %s216
        %p219 = scmp.ne.s32.totalorder %s218, 0
        %p220 = scmp.lt.s32.totalorder %s218, 0
        %p221 = pnand %p220, %p219
        %p222 = pneg %p221
        %s223 = sadd.s32 %s218, 2
        %s224 = scalar_select %p222, %s223, %s218
        %p225 = scmp.lt.s32.totalorder %s224, 1
        %s226 = scalar_select %p225, %s224, 1
        %s227 = smul.addr %s226, 8
        %s228 = scalar_lea.vmem %s1, %s227
        %p229 = pneg %p90
        %p230 = pneg %p87
        %p231 = pneg %p111
        %p232 = pneg %p108
        %p233 = pneg %p137
        %p234 = pneg %p134
        %s235 = sand.u32 %s124, 1
        %s236 = scalar_lea.sflag [#allocation3], %s235
        %s237 = sand.u32 %s124, 1
        %s238 = smul.addr %s237, 8
        %s239 = scalar_lea.vmem [#allocation2], %s238
        %p240 = scmp.lt.s32.totalorder %s17, 1
        %s241 = scalar_select %p240, %s17, 1
        %s242 = smul.addr %s241, 8
        %s243 = scalar_lea.vmem %s0, %s242
        %s244 = sadd.s32 %s17, 1
        %p245 = scmp.lt.s32.totalorder %s244, 0
        %s246 = ssub.s32 0, %s244
        %s247 = scalar_select %p245, %s246, %s244
        %s248 = sand.u32 %s247, 1
        %s249 = ssub.s32 0, %s248
        %s250 = scalar_select %p245, %s249, %s248
        %p251 = scmp.ne.s32.totalorder %s250, 0
        %p252 = scmp.lt.s32.totalorder %s250, 0
        %p253 = pnand %p252, %p251
        %p254 = pneg %p253
        %s255 = sadd.s32 %s250, 2
        %s256 = scalar_select %p254, %s255, %s250
        %p257 = scmp.lt.s32.totalorder %s256, 1
        %s258 = scalar_select %p257, %s256, 1
        %s259 = smul.addr %s258, 8
        %s260 = scalar_lea.vmem %s1, %s259
        %s261 = sadd.s32 %s17, 1
        %p262 = scmp.lt.s32.totalorder %s261, 0
        %s263 = ssub.s32 0, %s261
        %s264 = scalar_select %p262, %s263, %s261
        %s265 = sand.u32 %s264, 1
        %s266 = ssub.s32 0, %s265
        %s267 = scalar_select %p262, %s266, %s265
        %p268 = scmp.ne.s32.totalorder %s267, 0
        %p269 = scmp.lt.s32.totalorder %s267, 0
        %p270 = pnand %p269, %p268
        %p271 = pneg %p270
        %s272 = sadd.s32 %s267, 2
        %s273 = scalar_select %p271, %s272, %s267
        %s274 = smul.u32 %s17, 8
        %v275 = vld [vmem:[%s243] sm:$0xff]
        %v276 = vld [vmem:[%s2] sm:$0xff]
        %v277 = vld [vmem:[%s2 + $0x8] sm:$0xff]
        %v278 = vld [vmem:[%s2 + $0x10] sm:$0xff]
        %v279 = vld [vmem:[%s2 + $0x18] sm:$0xff]
        %vm280 = vcmask 261120
        %v282 = vsel %vm280, %v275, 0
        %284 = vmatprep.subr.mxu0 0.0
        %285 = vmatpush1.msra.mxu0 %v276
        %286 = vmatprep.subr.mxu0 0.0
        %287 = vmatpush1.msra.mxu0 %v277
        %288 = vmatprep.subr.mxu0 0.0
        %289 = vmatpush1.msra.mxu0 %v278
        %290 = vmatprep.subr.mxu0 0.0
        %291 = vmatpush1.msra.mxu0 %v279
        %292 = vmatprep.subr.mxu0 0.0
        %293 = vmatpush1.msra.mxu0 0.0
        %294 = vmatprep.subr.mxu0 0.0
        %295 = vmatpush1.msra.mxu0 0.0
        %296 = vmatprep.subr.mxu0 0.0
        %297 = vmatpush1.msra.mxu0 0.0
        %298 = vmatprep.subr.mxu0 0.0
        %299 = vmatpush1.msra.mxu0 0.0
        %300 = vmatprep.subr.mxu0 0.0
        %301 = vmatpush1.msra.mxu0 0.0
        %302 = vmatprep.subr.mxu0 0.0
        %303 = vmatpush1.msra.mxu0 0.0
        %304 = vmatprep.subr.mxu0 0.0
        %305 = vmatpush1.msra.mxu0 0.0
        %306 = vmatprep.subr.mxu0 0.0
        %307 = vmatpush1.msra.mxu0 0.0
        %308 = vmatprep.subr.mxu0 0.0
        %309 = vmatpush1.msra.mxu0 0.0
        %310 = vmatprep.subr.mxu0 0.0
        %311 = vmatpush1.msra.mxu0 0.0
        %312 = vmatprep.subr.mxu0 0.0
        %313 = vmatpush1.msra.mxu0 0.0
        %314 = vmatprep.subr.mxu0 0.0
        %315 = vmatpush1.msra.mxu0 0.0
        %316 = vmatprep.subr.mxu0 0.0
        %317 = vmatpush1.msra.mxu0 0.0
        %318 = vmatprep.subr.mxu0 0.0
        %319 = vmatpush1.msra.mxu0 0.0
        %320 = vmatprep.subr.mxu0 0.0
        %321 = vmatpush1.msra.mxu0 0.0
        %322 = vmatprep.subr.mxu0 0.0
        %323 = vmatpush1.msra.mxu0 0.0
        %324 = vmatprep.subr.mxu0 0.0
        %325 = vmatpush1.msra.mxu0 0.0
        %326 = vmatprep.subr.mxu0 0.0
        %327 = vmatpush1.msra.mxu0 0.0
        %328 = vmatprep.subr.mxu0 0.0
        %329 = vmatpush1.msra.mxu0 0.0
        %330 = vmatprep.subr.mxu0 0.0
        %331 = vmatpush1.msra.mxu0 0.0
        %332 = vmatprep.subr.mxu0 0.0
        %333 = vmatpush1.msra.mxu0 0.0
        %334 = vmatprep.subr.mxu0 0.0
        %335 = vmatpush1.msra.mxu0 0.0
        %336 = vmatprep.subr.mxu0 0.0
        %337 = vmatpush1.msra.mxu0 0.0
        %338 = vmatprep.subr.mxu0 0.0
        %339 = vmatpush1.msra.mxu0 0.0
        %340 = vmatprep.subr.mxu0 0.0
        %341 = vmatpush1.msra.mxu0 0.0
        %342 = vmatprep.subr.mxu0 0.0
        %343 = vmatpush1.msra.mxu0 0.0
        %344 = vmatprep.subr.mxu0 0.0
        %345 = vmatpush1.msra.mxu0 0.0
        %346 = vmatprep.subr.mxu0 0.0
        %347 = vmatpush1.msra.mxu0 0.0
        %348 = vmatprep.mubr.f32.mxu0 0.0
        %349 = vmatmul.mubr.f32.gmra.mrb[0].mxu0 %v282
        %v350 = vpop.f32.mrb[0].mxu0
        %v351 = vadd.f32 0.0, %v350
        %v352 = vpop.f32.mrb[0].mxu0
        %353 = vdwg.mxu0
        %v354 = vlaneseq
        %v355 = vand.u32 %v354, 127
        %v356 = vlaneseq
        %v357 = vshrl.u32 %v356, 7
        %v358 = vstv %s274
        %v359 = vadd.s32 %v358, %v357
        %vm360 = vcmp.lt.s32.totalorder %v359, 8
        %v361 = vadd.s32 %v359, 8
        %v362 = vsub.s32 %v359, 8
        %v363 = vsel %vm360, %v361, %v362
        %vm364 = vcmp.ne.s32.totalorder %v355, %v359
        %vm365 = vcmp.ne.s32.totalorder %v355, %v363
        %vm366 = vmand %vm364, %vm365
        %v367 = vmul.f32 %v351, 20.0
        %v368 = vsel %vm366, %v367, -1e+30
        %vm369 = vcmask 130048
        %v370 = vsel %vm369, %v368, -inf
        %371 = vmax.xlane.f32.xlu0 %v370
        %v372 = vpop.xlane.xlu0 %371
        %v373 = vsub.f32 %v368, %v372
        %v374 = vmul.f32 %v373, 1.442695
        %v375 = vpow.pop %v374
        %v376 = vsel %vm369, %v375, 0.0
        %377 = vadd.xlane.f32.xlu0 %v376
        %v378 = vpop.xlane.xlu0 %377
        %v379 = vrcp.pop %v378
        %v380 = vlog2.pop %v378
        %v381 = vmul.f32 %v380, 0.6931472
        %v382 = vmul.f32 %v375, %v373
        %v383 = vsel %vm369, %v382, 0.0
        %384 = vadd.xlane.f32.xlu0 %v383
        %v385 = vpop.xlane.xlu0 %384
        %v386 = vmul.f32 %v385, %v379
        %v387 = vsub.f32 %v381, %v386
        %v388 = vmul.f32 %v387, 0.37892318
        %v389 = vsub.f32 1.0, %v388
        %v390 = vmul.f32 %v389, %v379
        %v391 = vmul.f32 %v390, %v375
        %v392 = vmin.f32 %v391, 1.0
        %v393 = vsel %vm369, %v392, 0.0
        %394 = vadd.xlane.f32.xlu0 %v393
        %v395 = vpop.xlane.xlu0 %394
        %v396 = vadd.f32 %v395, 1.0
        %v397 = vrcp.pop %v396
        %v398 = vld [vmem:[%s260] sm:$0xff]
        %v399 = vmul.f32 %v275, %v398
        %v400 = vsel %vm280, %v399, 0.0
        %401 = vadd.xlane.f32.xlu0 %v400
        %v402 = vpop.xlane.xlu0 %401
        %v403 = vmul.f32 %v402, 10.0
        %v404 = vmul.f32 %v372, 0.5
        %v405 = vmax.f32 %v404, %v403
        %v406 = vmul.f32 %v368, 0.5
        %v407 = vsub.f32 %v406, %v405
        %v408 = vmul.f32 %v407, 1.442695
        %v409 = vpow.pop %v408
        %v410 = vsel %vm369, %v409, 0.0
        %411 = vadd.xlane.f32.xlu0 %v410
        %v412 = vpop.xlane.xlu0 %411
        %v413 = vsub.f32 %v403, %v405
        %v414 = vmul.f32 %v413, 1.442695
        %v415 = vpow.pop %v414
        %v416 = vadd.f32 %v412, %v415
        %v417 = vlog2.pop %v416
        %v418 = vmul.f32 %v417, 0.6931472
        %v419 = vadd.f32 %v405, %v418
        %v420 = vmul.f32 %v392, %v367
        %v421 = vsel %vm369, %v420, 0.0
        %422 = vadd.xlane.f32.xlu0 %v421
        %v423 = vpop.xlane.xlu0 %422
        %v424 = vmul.f32 %v423, 0.5
        %v425 = vadd.f32 %v403, %v424
        %v426 = vmul.f32 %v425, %v397
        %v427 = vsub.f32 %v419, %v426
        %vm428 = vcmask 7168
        %v429 = vsel %vm428, %v427, 0.0
        %430 = vadd.xlane.f32.xlu0 %v429
        %v431 = vpop.xlane.xlu0 %430
        %v432 = vrot.slane %v431, 4
        %v433 = vadd.f32 %v431, %v432
        %v434 = vrot.slane %v433, 2
        %v435 = vadd.f32 %v433, %v434
        %v436 = vrot.slane %v435, 1
        %v437 = vadd.f32 %v435, %v436
        %s438 = vtos %v437
        %v439 = vstv %s438
        %440 = vst [vmem:[%s239] sm:$0xff] %v439
        %s441 = sand.u32 %s124, 1
        %s442 = scalar_lea.sflag [#allocation3], %s441
        %s443 = sand.u32 %s124, 1
        %s444 = smul.addr %s443, 8
        %s445 = scalar_lea.vmem [#allocation2], %s444
        // Predicated region
        $region33: #{tpu_custom_call.1} parent=31 // pred_check
          %p446 = pneg %p134
        $region34: #{tpu_custom_call.1} parent=31 // pred_check_branch
          %448 = sbr.rel (%p446) target = $region36
        $region35: #{tpu_custom_call.1} parent=31 // pred_region
          %s450 = ssub.s32 128, 128
          %451 = vsyncadd %s442, %s450
          %s452 = smul.addr %s17, 128
          %s453 = scalar_lea.hbm %s3, %s452
          %s455 = sshll.u32 %s445, 4
          %s456 = int_to_ptr.vmem [resolvable:$true] %s455
          %458 = dma.vmem_to_hbm [thread:$0]  %s456, 128, %s453, %s442
        $region36: #{tpu_custom_call.1} parent=31 // pred_fallthru
          _
      $region32: #{tpu_custom_call.1} parent=5 // pred_fallthru
        _
      %p459 = scmp.le.s32.totalorder 2, %s12
      // Predicated region
      $region37: #{tpu_custom_call.1} parent=5 // pred_check
        %p460 = pneg %p459
      $region38: #{tpu_custom_call.1} parent=5 // pred_check_branch
        %462 = sbr.rel (%p460) target = $region40
      $region39: #{tpu_custom_call.1} parent=5 // pred_region
        %s463 = ssub.s32 %s12, 2
        // Predicated region
        $region41: #{tpu_custom_call.1} parent=39 // pred_check
          %p464 = pneg %p140
        $region42: #{tpu_custom_call.1} parent=39 // pred_check_branch
          %466 = sbr.rel (%p464) target = $region44
        $region43: #{tpu_custom_call.1} parent=39 // pred_region
          %s467 = sand.u32 %s125, 1
          %s468 = scalar_lea.sflag [#allocation3], %s467
          %s469 = sand.u32 %s125, 1
          %s470 = smul.addr %s469, 8
          %s471 = scalar_lea.vmem [#allocation2], %s470
          %472 = dma.done %s468, 128
        $region44: #{tpu_custom_call.1} parent=39 // pred_fallthru
          _
      $region40: #{tpu_custom_call.1} parent=5 // pred_fallthru
        _
    $region6: #{tpu_custom_call.1} parent=1 // loop_footer
      %s16 = sadd.s32 1, %s12
    $region7: #{tpu_custom_call.1} parent=1 // loop_footer_branch
      %11 = sbr.rel target = $region3
    $region8: #{tpu_custom_call.1} parent=1 // loop_exit
      _
    %473 = vsyncpa [#allocation3], 1
    %s474 = scalar_lea.sflag [#allocation3], 1
    %475 = vsyncpa %s474, 1

</llo_original>
